<compile_context>
chip_gen: v6e
topology: v6e:2x2x1
jax: 0.10.0
libtpu: 0.0.40
codegen_flags: <defaults>
</compile_context>

<pallas_src>
import functools

import jax
import jax.numpy as jnp
from jax.experimental import pallas as pl
from jax.experimental.pallas import tpu as pltpu


def _nconv_kernel(x_ref, w_ref, m_ref, o_ref, *,
                  batch, k_taps, c_in, c_out, h_rows, r_lanes, wp_lanes):
    """Single invocation computes the whole batch.

    x_ref: (C_in, batch * wp_lanes) f32  zero-padded input slab,
           lane = b*wp_lanes + w_pad*h_rows + h   (w-major per batch)
    w_ref: (3*C_out, K*C_in + 1)    bf16 fused conv1/2/3 weights, bias = last col
    m_ref: (r_lanes, r_lanes)       f32  kron(a^T, I_H)
    o_ref: (C_out, batch * r_lanes) f32  lane-dense output slab
    """
    wmat = w_ref[...]
    # Per-tap weight blocks and the folded bias column (hoisted out of the loop;
    # broadcast_in_dim is not CSE'd by JAX, so broadcast once here).
    w_taps = [wmat[:, k * c_in:(k + 1) * c_in] for k in range(k_taps)]
    bias = jnp.broadcast_to(
        wmat[:, k_taps * c_in:].astype(jnp.float32), (3 * c_out, r_lanes))
    m = m_ref[...]

    for b in range(batch):                       # static unroll (batch is tiny)
        base = b * wp_lanes
        conv = bias
        for k in range(k_taps):                  # K shifted tap loads (im2col in-kernel)
            start = base + k * h_rows
            tap = x_ref[:, start:start + r_lanes]              # (C_in, R) f32
            conv = conv + jnp.dot(w_taps[k], tap.astype(jnp.bfloat16),
                                  preferred_element_type=jnp.float32)
        c1 = conv[0:c_out, :]
        c2 = conv[c_out:2 * c_out, :]
        c3 = conv[2 * c_out:3 * c_out, :]
        # F.relu is what the PyTorch forward uses (its LeakyReLU member is unused).
        y = jnp.maximum(c1 + jax.nn.sigmoid(c2) + c3, 0.0)      # (C_out, R) f32

        # Adjacency matmul for this batch: lane-dense 128-wide output store.
        o_ref[:, b * r_lanes:(b + 1) * r_lanes] = jnp.dot(
            y, m, preferred_element_type=jnp.float32).astype(o_ref.dtype)


def make_nconv(a, weights, biases, kernel_size, time_steps):
    """Build an nconv forward closure.  The data-independent operands (fused
    conv weights with bias column, kron(a^T, I_H)) are built ONCE here,
    hoisted out of the per-call path (perf-review item 3)."""
    W = a.shape[0]
    H = int(time_steps)
    K = int(kernel_size)
    P = (K - 1) // 2
    Wp = W + 2 * P
    C_in, C_out = weights.shape[2], weights.shape[3]
    R = W * H                       # lanes per batch of the output slab

    # fused conv weights: wmat[conv*C_out+co, k*C_in+ci] = weights[conv, k, ci, co],
    # bias folded in as the last column; cast to bf16 for the MXU (accum stays f32).
    wmat = jnp.transpose(weights, (0, 3, 1, 2)).reshape(3 * C_out, K * C_in)
    wmat_aug = jnp.concatenate(
        [wmat, biases.reshape(3 * C_out, 1)], axis=1).astype(jnp.bfloat16)

    # adjacency lifted onto the flattened (w, h) lane axis (kept f32):
    #   out_T = y_T @ (a^T kron I_H)  <=>  out[b,h,w,c] = sum_v a[w,v] y[b,h,v,c]
    m = jnp.kron(a.T, jnp.eye(H, dtype=jnp.float32)).astype(jnp.float32)
    # TODO(synk): for large W*H switch to a (W, W) row-panel matmul + lane tiling.

    @jax.jit
    def forward(x):
        B = x.shape[0]
        assert x.shape == (B, H, W, C_in)
        # zero-pad along W (== Conv2d padding) and flatten to the lane-dense slab
        # x_slab[c, b*Wp*H + wp*H + h] = xp[b, h, wp, c]   (pure layout plumbing)
        xp = jnp.pad(x, ((0, 0), (0, 0), (P, P), (0, 0)))
        x_slab = jnp.transpose(xp, (3, 0, 2, 1)).reshape(C_in, B * Wp * H)

        kernel = functools.partial(
            _nconv_kernel, batch=B, k_taps=K, c_in=C_in, c_out=C_out,
            h_rows=H, r_lanes=R, wp_lanes=Wp * H)

        cost = pl.CostEstimate(
            flops=2 * B * (3 * C_out) * C_in * K * R + 2 * B * C_out * R * R,
            transcendentals=B * C_out * R,
            bytes_accessed=(C_in * B * Wp * H * 4
                            + 3 * C_out * (K * C_in + 1) * 2
                            + R * R * 4
                            + C_out * B * R * 4))

        out_slab = pl.pallas_call(
            kernel,
            out_shape=jax.ShapeDtypeStruct((C_out, B * R), jnp.float32),
            in_specs=[
                pl.BlockSpec(memory_space=pltpu.MemorySpace.VMEM),  # x_slab
                pl.BlockSpec(memory_space=pltpu.MemorySpace.VMEM),  # fused weights
                pl.BlockSpec(memory_space=pltpu.MemorySpace.VMEM),  # kron(a^T, I_H)
            ],
            out_specs=pl.BlockSpec(memory_space=pltpu.MemorySpace.VMEM),
            cost_estimate=cost,
        )(x_slab, wmat_aug, m)

        # (C_out, B*R) -> (B, H, W, C_out): one XLA transpose at the module
        # boundary (keep the lane-dense slab layout between stacked layers).
        return out_slab.reshape(C_out, B, W, H).transpose(1, 3, 2, 0)

    return forward


def nconv_reference(x, a, weights, biases, kernel_size):
    """Pure-JAX f32 reference matching the PyTorch forward."""
    B, H, W, C_in = x.shape
    K = kernel_size
    P = (K - 1) // 2
    xp = jnp.pad(x, ((0, 0), (0, 0), (P, P), (0, 0)))

    def one_conv(c):
        out = biases[c][None, None, None, :]
        for k in range(K):
            out = out + jnp.einsum("bhwi,io->bhwo", xp[:, :, k:k + W, :],
                                   weights[c, k])
        return out

    y = jax.nn.relu(one_conv(0) + jax.nn.sigmoid(one_conv(1)) + one_conv(2))
    return jnp.einsum("wv,bhvc->bhwc", a, y)


if __name__ == "__main__":
    # small shapes consistent with the module: B=2, H(time)=8, W(nodes)=16,
    # c_in=4, c_out=4, kernel_size=3  (W*H = 128 -> lane-dense slabs)
    B, H, W = 2, 8, 16
    C_IN, C_OUT, K = 4, 4, 3

    key = jax.random.PRNGKey(0)
    kx, ka, kw, kb = jax.random.split(key, 4)

    x = jax.random.normal(kx, (B, H, W, C_IN), dtype=jnp.float32)
    a = jax.random.normal(ka, (W, W), dtype=jnp.float32)

    # deterministic parameter init: 3 convs, weight (K, C_in, C_out) + bias (C_out,)
    fan_in = C_IN * K
    bound = 1.0 / (fan_in ** 0.5)
    weights = jax.random.uniform(kw, (3, K, C_IN, C_OUT), dtype=jnp.float32,
                                 minval=-bound, maxval=bound)
    biases = jax.random.uniform(kb, (3, C_OUT), dtype=jnp.float32,
                                minval=-bound, maxval=bound)

    nconv_fwd = make_nconv(a, weights, biases, K, H)   # hoisted operand prep
    out = nconv_fwd(x)
    jax.block_until_ready(out)

    ref = nconv_reference(x, a, weights, biases, K)
    assert out.shape == (B, H, W, C_OUT)
    # conv-matmul inputs are bf16 (perf feedback); accumulation, elementwise and
    # the adjacency matmul stay f32 -> tolerance sized for bf16 input rounding
    # (the all-f32 variant of this kernel matches the reference at 1e-3).
    assert jnp.allclose(out, ref, rtol=5e-2, atol=5e-2), "mismatch vs reference"

    print("KERNEL_OK")
</pallas_src>

<mosaic_0001>
module attributes {stable_mosaic.version = 11 : i64} {
  func.func @_nconv_kernel(%arg0: memref<4x288xf32, #tpu.memory_space<vmem>>, %arg1: memref<12x13xbf16, #tpu.memory_space<vmem>>, %arg2: memref<128x128xf32, #tpu.memory_space<vmem>>, %arg3: memref<4x256xf32, #tpu.memory_space<vmem>>) attributes {dimension_semantics = [], scalar_prefetch = 0 : i64, scratch_operands = 0 : i64, tpu.core_type = #tpu.core_type<tc>} {
    %c0 = arith.constant 0 : index
    %c0_0 = arith.constant 0 : index
    %0 = vector.load %arg1[%c0, %c0_0] : memref<12x13xbf16, #tpu.memory_space<vmem>>, vector<12x13xbf16>
    %1 = vector.extract_strided_slice %0 {offsets = [0, 0], sizes = [12, 4], strides = [1, 1]} : vector<12x13xbf16> to vector<12x4xbf16>
    %2 = vector.extract_strided_slice %0 {offsets = [0, 4], sizes = [12, 4], strides = [1, 1]} : vector<12x13xbf16> to vector<12x4xbf16>
    %3 = vector.extract_strided_slice %0 {offsets = [0, 8], sizes = [12, 4], strides = [1, 1]} : vector<12x13xbf16> to vector<12x4xbf16>
    %4 = vector.extract_strided_slice %0 {offsets = [0, 12], sizes = [12, 1], strides = [1, 1]} : vector<12x13xbf16> to vector<12x1xbf16>
    %5 = arith.extf %4 : vector<12x1xbf16> to vector<12x1xf32>
    %6 = vector.shape_cast %5 : vector<12x1xf32> to vector<12x1xf32>
    %7 = vector.broadcast %6 : vector<12x1xf32> to vector<12x128xf32>
    %c0_1 = arith.constant 0 : index
    %c0_2 = arith.constant 0 : index
    %8 = vector.load %arg2[%c0_1, %c0_2] : memref<128x128xf32, #tpu.memory_space<vmem>>, vector<128x128xf32>
    %c0_3 = arith.constant 0 : index
    %c0_4 = arith.constant 0 : index
    %9 = vector.load %arg0[%c0_3, %c0_4] : memref<4x288xf32, #tpu.memory_space<vmem>>, vector<4x128xf32>
    %10 = arith.truncf %9 : vector<4x128xf32> to vector<4x128xbf16>
    %cst = arith.constant dense<0.000000e+00> : vector<12x128xf32>
    %11 = tpu.matmul %1, %10, %cst {dimension_numbers = #tpu.dot_dimension_numbers<[1], [0], [0], [1], [0, 0, 1, 1], [], []>} : vector<12x4xbf16>, vector<4x128xbf16>, vector<12x128xf32> -> vector<12x128xf32>
    %12 = arith.addf %7, %11 : vector<12x128xf32>
    %c0_5 = arith.constant 0 : index
    %c8 = arith.constant 8 : index
    %13 = vector.load %arg0[%c0_5, %c8] : memref<4x288xf32, #tpu.memory_space<vmem>>, vector<4x128xf32>
    %14 = arith.truncf %13 : vector<4x128xf32> to vector<4x128xbf16>
    %cst_6 = arith.constant dense<0.000000e+00> : vector<12x128xf32>
    %15 = tpu.matmul %2, %14, %cst_6 {dimension_numbers = #tpu.dot_dimension_numbers<[1], [0], [0], [1], [0, 0, 1, 1], [], []>} : vector<12x4xbf16>, vector<4x128xbf16>, vector<12x128xf32> -> vector<12x128xf32>
    %16 = arith.addf %12, %15 : vector<12x128xf32>
    %c0_7 = arith.constant 0 : index
    %c16 = arith.constant 16 : index
    %17 = vector.load %arg0[%c0_7, %c16] : memref<4x288xf32, #tpu.memory_space<vmem>>, vector<4x128xf32>
    %18 = arith.truncf %17 : vector<4x128xf32> to vector<4x128xbf16>
    %cst_8 = arith.constant dense<0.000000e+00> : vector<12x128xf32>
    %19 = tpu.matmul %3, %18, %cst_8 {dimension_numbers = #tpu.dot_dimension_numbers<[1], [0], [0], [1], [0, 0, 1, 1], [], []>} : vector<12x4xbf16>, vector<4x128xbf16>, vector<12x128xf32> -> vector<12x128xf32>
    %20 = arith.addf %16, %19 : vector<12x128xf32>
    %21 = vector.extract_strided_slice %20 {offsets = [0, 0], sizes = [4, 128], strides = [1, 1]} : vector<12x128xf32> to vector<4x128xf32>
    %22 = vector.extract_strided_slice %20 {offsets = [4, 0], sizes = [4, 128], strides = [1, 1]} : vector<12x128xf32> to vector<4x128xf32>
    %23 = vector.extract_strided_slice %20 {offsets = [8, 0], sizes = [4, 128], strides = [1, 1]} : vector<12x128xf32> to vector<4x128xf32>
    %24 = arith.negf %22 : vector<4x128xf32>
    %25 = math.exp %24 : vector<4x128xf32>
    %cst_9 = arith.constant 1.000000e+00 : f32
    %26 = vector.broadcast %cst_9 : f32 to vector<4x128xf32>
    %27 = arith.addf %26, %25 : vector<4x128xf32>
    %28 = arith.divf %26, %27 : vector<4x128xf32>
    %29 = arith.addf %21, %28 : vector<4x128xf32>
    %30 = arith.addf %29, %23 : vector<4x128xf32>
    %cst_10 = arith.constant 0.000000e+00 : f32
    %31 = vector.broadcast %cst_10 : f32 to vector<4x128xf32>
    %32 = arith.maximumf %30, %31 : vector<4x128xf32>
    %cst_11 = arith.constant dense<0.000000e+00> : vector<4x128xf32>
    %33 = tpu.matmul %32, %8, %cst_11 {dimension_numbers = #tpu.dot_dimension_numbers<[1], [0], [0], [1], [0, 0, 1, 1], [], []>} : vector<4x128xf32>, vector<128x128xf32>, vector<4x128xf32> -> vector<4x128xf32>
    %c0_12 = arith.constant 0 : index
    %c0_13 = arith.constant 0 : index
    %34 = vector.load %arg3[%c0_12, %c0_13] : memref<4x256xf32, #tpu.memory_space<vmem>>, vector<4x128xf32>
    tpu.vector_store %arg3[%c0_12, %c0_13], %33 {strides = array<i32>} : memref<4x256xf32, #tpu.memory_space<vmem>>, vector<4x128xf32>,
    %c0_14 = arith.constant 0 : index
    %c144 = arith.constant 144 : index
    %35 = vector.load %arg0[%c0_14, %c144] : memref<4x288xf32, #tpu.memory_space<vmem>>, vector<4x128xf32>
    %36 = arith.truncf %35 : vector<4x128xf32> to vector<4x128xbf16>
    %cst_15 = arith.constant dense<0.000000e+00> : vector<12x128xf32>
    %37 = tpu.matmul %1, %36, %cst_15 {dimension_numbers = #tpu.dot_dimension_numbers<[1], [0], [0], [1], [0, 0, 1, 1], [], []>} : vector<12x4xbf16>, vector<4x128xbf16>, vector<12x128xf32> -> vector<12x128xf32>
    %38 = arith.addf %7, %37 : vector<12x128xf32>
    %c0_16 = arith.constant 0 : index
    %c152 = arith.constant 152 : index
    %39 = vector.load %arg0[%c0_16, %c152] : memref<4x288xf32, #tpu.memory_space<vmem>>, vector<4x128xf32>
    %40 = arith.truncf %39 : vector<4x128xf32> to vector<4x128xbf16>
    %cst_17 = arith.constant dense<0.000000e+00> : vector<12x128xf32>
    %41 = tpu.matmul %2, %40, %cst_17 {dimension_numbers = #tpu.dot_dimension_numbers<[1], [0], [0], [1], [0, 0, 1, 1], [], []>} : vector<12x4xbf16>, vector<4x128xbf16>, vector<12x128xf32> -> vector<12x128xf32>
    %42 = arith.addf %38, %41 : vector<12x128xf32>
    %c0_18 = arith.constant 0 : index
    %c160 = arith.constant 160 : index
    %43 = vector.load %arg0[%c0_18, %c160] : memref<4x288xf32, #tpu.memory_space<vmem>>, vector<4x128xf32>
    %44 = arith.truncf %43 : vector<4x128xf32> to vector<4x128xbf16>
    %cst_19 = arith.constant dense<0.000000e+00> : vector<12x128xf32>
    %45 = tpu.matmul %3, %44, %cst_19 {dimension_numbers = #tpu.dot_dimension_numbers<[1], [0], [0], [1], [0, 0, 1, 1], [], []>} : vector<12x4xbf16>, vector<4x128xbf16>, vector<12x128xf32> -> vector<12x128xf32>
    %46 = arith.addf %42, %45 : vector<12x128xf32>
    %47 = vector.extract_strided_slice %46 {offsets = [0, 0], sizes = [4, 128], strides = [1, 1]} : vector<12x128xf32> to vector<4x128xf32>
    %48 = vector.extract_strided_slice %46 {offsets = [4, 0], sizes = [4, 128], strides = [1, 1]} : vector<12x128xf32> to vector<4x128xf32>
    %49 = vector.extract_strided_slice %46 {offsets = [8, 0], sizes = [4, 128], strides = [1, 1]} : vector<12x128xf32> to vector<4x128xf32>
    %50 = arith.negf %48 : vector<4x128xf32>
    %51 = math.exp %50 : vector<4x128xf32>
    %cst_20 = arith.constant 1.000000e+00 : f32
    %52 = vector.broadcast %cst_20 : f32 to vector<4x128xf32>
    %53 = arith.addf %52, %51 : vector<4x128xf32>
    %54 = arith.divf %52, %53 : vector<4x128xf32>
    %55 = arith.addf %47, %54 : vector<4x128xf32>
    %56 = arith.addf %55, %49 : vector<4x128xf32>
    %cst_21 = arith.constant 0.000000e+00 : f32
    %57 = vector.broadcast %cst_21 : f32 to vector<4x128xf32>
    %58 = arith.maximumf %56, %57 : vector<4x128xf32>
    %cst_22 = arith.constant dense<0.000000e+00> : vector<4x128xf32>
    %59 = tpu.matmul %58, %8, %cst_22 {dimension_numbers = #tpu.dot_dimension_numbers<[1], [0], [0], [1], [0, 0, 1, 1], [], []>} : vector<4x128xf32>, vector<128x128xf32>, vector<4x128xf32> -> vector<4x128xf32>
    %c0_23 = arith.constant 0 : index
    %c128 = arith.constant 128 : index
    %60 = vector.load %arg3[%c0_23, %c128] : memref<4x256xf32, #tpu.memory_space<vmem>>, vector<4x128xf32>
    tpu.vector_store %arg3[%c0_23, %c128], %59 {strides = array<i32>} : memref<4x256xf32, #tpu.memory_space<vmem>>, vector<4x128xf32>,
    return
  }
}

</mosaic_0001>

<llo_original>
// kernel: forward.1
$region0: #{forward.1}
  #allocation0 [shape = 'u32[]', space=smem, size = 0x4, offset = 0x4, fixed_abs, tag = 'smem constant byte address 0x4 - core index']
  #allocation1 [shape = 'u32[144,128]{1,0:T(1,128)}', space=vmem, size = 0x12000, scoped, tag = 'internal scratch']
  %s0 = inlined_call_operand.vmem [shape: f32[4,288], index: 0, kind: input, shape index: {}]
  %s1 = inlined_call_operand.vmem [shape: bf16[12,13], index: 1, kind: input, shape index: {}]
  %s2 = inlined_call_operand.vmem [shape: f32[128,128], index: 2, kind: input, shape index: {}]
  %s3 = inlined_call_operand.vmem [shape: f32[4,256], index: 3, kind: output, shape index: {}]
  %s4 = sld [smem:[#allocation0]]
  $region22: #{forward.1} parent=0
    _
  %s6 = ssub.s32 1, %s4
  %s7 = scalar_select 0, %s6, %s4
  // Predicated region
  $region2: #{forward.1} parent=0 // pred_check
    _
  $region3: #{forward.1} parent=0 // pred_check_branch
    %9 = sbr.rel (0) target = $region5
  $region4: #{forward.1} parent=0 // pred_region
    _
  $region5: #{forward.1} parent=0 // pred_fallthru
    _
  // Predicated region
  $region6: #{forward.1} parent=0 // pred_check
    _
  $region7: #{forward.1} parent=0 // pred_check_branch
    %11 = sbr.rel (0) target = $region9
  $region8: #{forward.1} parent=0 // pred_region
    _
  $region9: #{forward.1} parent=0 // pred_fallthru
    _
  // Predicated region
  $region10: #{forward.1} parent=0 // pred_check
    _
  $region11: #{forward.1} parent=0 // pred_check_branch
    %13 = sbr.rel (0) target = $region13
  $region12: #{forward.1} parent=0 // pred_region
    _
  $region13: #{forward.1} parent=0 // pred_fallthru
    _
  %v15 = vld [vmem:[%s1] sm:$0xf]
  %v16 = vld [vmem:[%s1 + $0x4] sm:$0x3]
  %v17 = vunpack.c.l.bf16 %v15
  %v18 = vunpack.c.l.bf16 %v16
  %20 = vset.pattern.permute.xlu0 12
  %21 = vperm.xlu0 %20, %v17
  %v22 = vpop.permute.xlu0 %21
  %25 = vset.pattern.permute.xlu0 12
  %26 = vperm.xlu0 %25, %v18
  %v27 = vpop.permute.xlu0 %26
  %v29 = vld [vmem:[%s2] sm:$0xff]
  %v30 = vld [vmem:[%s2 + $0x8] sm:$0xff]
  %v31 = vld [vmem:[%s2 + $0x10] sm:$0xff]
  %v32 = vld [vmem:[%s2 + $0x18] sm:$0xff]
  %v33 = vld [vmem:[%s2 + $0x20] sm:$0xff]
  %v34 = vld [vmem:[%s2 + $0x28] sm:$0xff]
  %v35 = vld [vmem:[%s2 + $0x30] sm:$0xff]
  %v36 = vld [vmem:[%s2 + $0x38] sm:$0xff]
  %v37 = vld [vmem:[%s2 + $0x40] sm:$0xff]
  %v38 = vld [vmem:[%s2 + $0x48] sm:$0xff]
  %v39 = vld [vmem:[%s2 + $0x50] sm:$0xff]
  %v40 = vld [vmem:[%s2 + $0x58] sm:$0xff]
  %v41 = vld [vmem:[%s2 + $0x60] sm:$0xff]
  %v42 = vld [vmem:[%s2 + $0x68] sm:$0xff]
  %v43 = vld [vmem:[%s2 + $0x70] sm:$0xff]
  %v44 = vld [vmem:[%s2 + $0x78] sm:$0xff]
  %v45 = vld [vmem:[%s0] sm:$0xf]
  %v46 = vpack.c.bf16 %v45, %v45
  %v49 = vunpack.c.l.b16 %v15
  %v50 = vunpack.c.l.b16 %v16
  %v51 = vpack.c.b16 %v50, %v49
  %vm52 = vcmask 31744
  %v54 = vsel %vm52, %v51, 0
  %vm56 = vcmask 1041408
  %v58 = vsel %vm56, %v46, 0
  %60 = vmatprep.subr.bf16.mxu0 0
  %61 = vmatpush1.bf16.msra.mxu0 0
  %62 = vmatprep.subr.bf16.mxu0 0
  %63 = vmatpush1.bf16.msra.mxu0 0
  %64 = vmatprep.subr.bf16.mxu0 0
  %65 = vmatpush1.bf16.msra.mxu0 0
  %66 = vmatprep.subr.bf16.mxu0 0
  %67 = vmatpush1.bf16.msra.mxu0 0
  %68 = vmatprep.subr.bf16.mxu0 0
  %69 = vmatpush1.bf16.msra.mxu0 0
  %70 = vmatprep.subr.bf16.mxu0 0
  %71 = vmatpush1.bf16.msra.mxu0 0
  %72 = vmatprep.subr.bf16.mxu0 0
  %73 = vmatpush1.bf16.msra.mxu0 0
  %74 = vmatprep.subr.bf16.mxu0 0
  %75 = vmatpush1.bf16.msra.mxu0 %v58
  %76 = vmatprep.subr.bf16.mxu0 0
  %77 = vmatpush2.bf16.msra.mxu0 0
  %78 = vmatprep.subr.bf16.mxu0 0
  %79 = vmatpush2.bf16.msra.mxu0 0
  %80 = vmatprep.subr.bf16.mxu0 0
  %81 = vmatpush2.bf16.msra.mxu0 0
  %82 = vmatprep.subr.bf16.mxu0 0
  %83 = vmatpush2.bf16.msra.mxu0 0
  %84 = vmatprep.subr.bf16.mxu0 0
  %85 = vmatpush2.bf16.msra.mxu0 0
  %86 = vmatprep.subr.bf16.mxu0 0
  %87 = vmatpush2.bf16.msra.mxu0 0
  %88 = vmatprep.subr.bf16.mxu0 0
  %89 = vmatpush2.bf16.msra.mxu0 0
  %90 = vmatprep.subr.bf16.mxu0 0
  %91 = vmatpush2.bf16.msra.mxu0 0
  %92 = vmatprep.mubr.bf16.mxu0 0
  %93 = vmatmul.mubr.bf16.gmra.mxu0 %v54
  %v94 = vpop.f32.mrf.mxu0
  %v95 = vadd.f32 0.0, %v94
  %v96 = vpop.f32.mrf.mxu0
  %v97 = vpop.f32.mrf.mxu0
  %v98 = vadd.f32 0.0, %v97
  %v99 = vpop.f32.mrf.mxu0
  %100 = vdwg.mxu0
  %v101 = vadd.f32 %v22, %v95
  %v102 = vadd.f32 %v27, %v98
  %v103 = vld [vmem:[%s0] sm:$0xff]
  %v105 = vcombine.high %v103, %v103
  %v107 = vpack.c.bf16 %v103, %v103
  %v108 = vpack.c.bf16 %v105, %v105
  %109 = vrot.lane.b32.xlu0 %v51, 124
  %v110 = vpop.permute.xlu0 %109
  %113 = vrot.lane.b32.xlu0 %v107, 120
  %v114 = vpop.permute.xlu0 %113
  %115 = vrot.lane.b32.xlu0 %v108, 120
  %v116 = vpop.permute.xlu0 %115
  %vm117 = vcmask 982016
  %v118 = vsel %vm117, %v114, %v116
  %v120 = vsel %vm52, %v110, 0
  %v123 = vsel %vm56, %v118, 0
  %125 = vmatprep.subr.bf16.mxu0 0
  %126 = vmatpush1.bf16.msra.mxu0 0
  %127 = vmatprep.subr.bf16.mxu0 0
  %128 = vmatpush1.bf16.msra.mxu0 0
  %129 = vmatprep.subr.bf16.mxu0 0
  %130 = vmatpush1.bf16.msra.mxu0 0
  %131 = vmatprep.subr.bf16.mxu0 0
  %132 = vmatpush1.bf16.msra.mxu0 0
  %133 = vmatprep.subr.bf16.mxu0 0
  %134 = vmatpush1.bf16.msra.mxu0 0
  %135 = vmatprep.subr.bf16.mxu0 0
  %136 = vmatpush1.bf16.msra.mxu0 0
  %137 = vmatprep.subr.bf16.mxu0 0
  %138 = vmatpush1.bf16.msra.mxu0 0
  %139 = vmatprep.subr.bf16.mxu0 0
  %140 = vmatpush1.bf16.msra.mxu0 %v123
  %141 = vmatprep.subr.bf16.mxu0 0
  %142 = vmatpush2.bf16.msra.mxu0 0
  %143 = vmatprep.subr.bf16.mxu0 0
  %144 = vmatpush2.bf16.msra.mxu0 0
  %145 = vmatprep.subr.bf16.mxu0 0
  %146 = vmatpush2.bf16.msra.mxu0 0
  %147 = vmatprep.subr.bf16.mxu0 0
  %148 = vmatpush2.bf16.msra.mxu0 0
  %149 = vmatprep.subr.bf16.mxu0 0
  %150 = vmatpush2.bf16.msra.mxu0 0
  %151 = vmatprep.subr.bf16.mxu0 0
  %152 = vmatpush2.bf16.msra.mxu0 0
  %153 = vmatprep.subr.bf16.mxu0 0
  %154 = vmatpush2.bf16.msra.mxu0 0
  %155 = vmatprep.subr.bf16.mxu0 0
  %156 = vmatpush2.bf16.msra.mxu0 0
  %157 = vmatprep.mubr.bf16.mxu0 0
  %158 = vmatmul.mubr.bf16.gmra.mxu0 %v120
  %v159 = vpop.f32.mrf.mxu0
  %v160 = vadd.f32 0.0, %v159
  %v161 = vpop.f32.mrf.mxu0
  %v162 = vpop.f32.mrf.mxu0
  %v163 = vadd.f32 0.0, %v162
  %v164 = vpop.f32.mrf.mxu0
  %165 = vdwg.mxu0
  %v166 = vadd.f32 %v101, %v160
  %v167 = vadd.f32 %v102, %v163
  %v168 = vld [vmem:[%s0] sm:$0xff]
  %v170 = vcombine.high %v168, %v168
  %v172 = vpack.c.bf16 %v168, %v168
  %v173 = vpack.c.bf16 %v170, %v170
  %174 = vrot.lane.b32.xlu0 %v51, 120
  %v175 = vpop.permute.xlu0 %174
  %178 = vrot.lane.b32.xlu0 %v172, 112
  %v179 = vpop.permute.xlu0 %178
  %180 = vrot.lane.b32.xlu0 %v173, 112
  %v181 = vpop.permute.xlu0 %180
  %vm182 = vcmask 916480
  %v183 = vsel %vm182, %v179, %v181
  %v185 = vsel %vm52, %v175, 0
  %v188 = vsel %vm56, %v183, 0
  %190 = vmatprep.subr.bf16.mxu0 0
  %191 = vmatpush1.bf16.msra.mxu0 0
  %192 = vmatprep.subr.bf16.mxu0 0
  %193 = vmatpush1.bf16.msra.mxu0 0
  %194 = vmatprep.subr.bf16.mxu0 0
  %195 = vmatpush1.bf16.msra.mxu0 0
  %196 = vmatprep.subr.bf16.mxu0 0
  %197 = vmatpush1.bf16.msra.mxu0 0
  %198 = vmatprep.subr.bf16.mxu0 0
  %199 = vmatpush1.bf16.msra.mxu0 0
  %200 = vmatprep.subr.bf16.mxu0 0
  %201 = vmatpush1.bf16.msra.mxu0 0
  %202 = vmatprep.subr.bf16.mxu0 0
  %203 = vmatpush1.bf16.msra.mxu0 0
  %204 = vmatprep.subr.bf16.mxu0 0
  %205 = vmatpush1.bf16.msra.mxu0 %v188
  %206 = vmatprep.subr.bf16.mxu0 0
  %207 = vmatpush2.bf16.msra.mxu0 0
  %208 = vmatprep.subr.bf16.mxu0 0
  %209 = vmatpush2.bf16.msra.mxu0 0
  %210 = vmatprep.subr.bf16.mxu0 0
  %211 = vmatpush2.bf16.msra.mxu0 0
  %212 = vmatprep.subr.bf16.mxu0 0
  %213 = vmatpush2.bf16.msra.mxu0 0
  %214 = vmatprep.subr.bf16.mxu0 0
  %215 = vmatpush2.bf16.msra.mxu0 0
  %216 = vmatprep.subr.bf16.mxu0 0
  %217 = vmatpush2.bf16.msra.mxu0 0
  %218 = vmatprep.subr.bf16.mxu0 0
  %219 = vmatpush2.bf16.msra.mxu0 0
  %220 = vmatprep.subr.bf16.mxu0 0
  %221 = vmatpush2.bf16.msra.mxu0 0
  %222 = vmatprep.mubr.bf16.mxu0 0
  %223 = vmatmul.mubr.bf16.gmra.mxu0 %v185
  %v224 = vpop.f32.mrf.mxu0
  %v225 = vadd.f32 0.0, %v224
  %v226 = vpop.f32.mrf.mxu0
  %v227 = vpop.f32.mrf.mxu0
  %v228 = vadd.f32 0.0, %v227
  %v229 = vpop.f32.mrf.mxu0
  %230 = vdwg.mxu0
  %v231 = vadd.f32 %v166, %v225
  %v232 = vadd.f32 %v167, %v228
  %v233 = vxor.u32 %v231, 2147483648
  %v234 = vmul.f32 %v233, 1.442695
  %v235 = vpow.pop %v234
  %v236 = vadd.f32 %v235, 1.0
  %v237 = vrcp.pop %v236
  %v238 = vmul.f32 1.0, %v237
  %v240 = vrot.slane %v238, 4
  %v242 = vadd.f32 %v231, %v240
  %v243 = vadd.f32 %v242, %v232
  %v244 = vmax.f32 %v243, 0.0
  %245 = vmatprep.subr.mxu0 0.0
  %246 = vmatpush1.msra.mxu0 %v44
  %247 = vmatprep.subr.mxu0 0.0
  %248 = vmatpush1.msra.mxu0 %v43
  %249 = vmatprep.subr.mxu0 0.0
  %250 = vmatpush1.msra.mxu0 %v42
  %251 = vmatprep.subr.mxu0 0.0
  %252 = vmatpush1.msra.mxu0 %v41
  %253 = vmatprep.subr.mxu0 0.0
  %254 = vmatpush1.msra.mxu0 %v40
  %255 = vmatprep.subr.mxu0 0.0
  %256 = vmatpush1.msra.mxu0 %v39
  %257 = vmatprep.subr.mxu0 0.0
  %258 = vmatpush1.msra.mxu0 %v38
  %259 = vmatprep.subr.mxu0 0.0
  %260 = vmatpush1.msra.mxu0 %v37
  %261 = vmatprep.subr.mxu0 0.0
  %262 = vmatpush1.msra.mxu0 %v36
  %263 = vmatprep.subr.mxu0 0.0
  %264 = vmatpush1.msra.mxu0 %v35
  %265 = vmatprep.subr.mxu0 0.0
  %266 = vmatpush1.msra.mxu0 %v34
  %267 = vmatprep.subr.mxu0 0.0
  %268 = vmatpush1.msra.mxu0 %v33
  %269 = vmatprep.subr.mxu0 0.0
  %270 = vmatpush1.msra.mxu0 %v32
  %271 = vmatprep.subr.mxu0 0.0
  %272 = vmatpush1.msra.mxu0 %v31
  %273 = vmatprep.subr.mxu0 0.0
  %274 = vmatpush1.msra.mxu0 %v30
  %275 = vmatprep.subr.mxu0 0.0
  %276 = vmatpush1.msra.mxu0 %v29
  %277 = vmatprep.subr.mxu0 0.0
  %278 = vmatpush2.msra.mxu0 0.0
  %279 = vmatprep.subr.mxu0 0.0
  %280 = vmatpush2.msra.mxu0 0.0
  %281 = vmatprep.subr.mxu0 0.0
  %282 = vmatpush2.msra.mxu0 0.0
  %283 = vmatprep.subr.mxu0 0.0
  %284 = vmatpush2.msra.mxu0 0.0
  %285 = vmatprep.subr.mxu0 0.0
  %286 = vmatpush2.msra.mxu0 0.0
  %287 = vmatprep.subr.mxu0 0.0
  %288 = vmatpush2.msra.mxu0 0.0
  %289 = vmatprep.subr.mxu0 0.0
  %290 = vmatpush2.msra.mxu0 0.0
  %291 = vmatprep.subr.mxu0 0.0
  %292 = vmatpush2.msra.mxu0 0.0
  %293 = vmatprep.subr.mxu0 0.0
  %294 = vmatpush2.msra.mxu0 0.0
  %295 = vmatprep.subr.mxu0 0.0
  %296 = vmatpush2.msra.mxu0 0.0
  %297 = vmatprep.subr.mxu0 0.0
  %298 = vmatpush2.msra.mxu0 0.0
  %299 = vmatprep.subr.mxu0 0.0
  %300 = vmatpush2.msra.mxu0 0.0
  %301 = vmatprep.subr.mxu0 0.0
  %302 = vmatpush2.msra.mxu0 0.0
  %303 = vmatprep.subr.mxu0 0.0
  %304 = vmatpush2.msra.mxu0 0.0
  %305 = vmatprep.subr.mxu0 0.0
  %306 = vmatpush2.msra.mxu0 0.0
  %307 = vmatprep.subr.mxu0 0.0
  %308 = vmatpush2.msra.mxu0 0.0
  %309 = vmatprep.mubr.f32.mxu0 0.0
  %310 = vmatmul.mubr.f32.gmra.mxu0 %v244
  %v311 = vpop.f32.mrf.mxu0
  %v312 = vadd.f32 0.0, %v311
  %v313 = vpop.f32.mrf.mxu0
  %314 = vdwg.mxu0
  %315 = vst [vmem:[%s3] sm:$0xf] %v312
  %v316 = vld [vmem:[%s0 + $0x4] sm:$0xff]
  %v318 = vcombine.high %v316, %v316
  %v320 = vpack.c.bf16 %v316, %v316
  %v321 = vpack.c.bf16 %v318, %v318
  %324 = vrot.lane.b32.xlu0 %v320, 112
  %v325 = vpop.permute.xlu0 %324
  %326 = vrot.lane.b32.xlu0 %v321, 112
  %v327 = vpop.permute.xlu0 %326
  %v328 = vsel %vm182, %v325, %v327
  %v330 = vsel %vm56, %v328, 0
  %332 = vmatprep.subr.bf16.mxu0 0
  %333 = vmatpush1.bf16.msra.mxu0 0
  %334 = vmatprep.subr.bf16.mxu0 0
  %335 = vmatpush1.bf16.msra.mxu0 0
  %336 = vmatprep.subr.bf16.mxu0 0
  %337 = vmatpush1.bf16.msra.mxu0 0
  %338 = vmatprep.subr.bf16.mxu0 0
  %339 = vmatpush1.bf16.msra.mxu0 0
  %340 = vmatprep.subr.bf16.mxu0 0
  %341 = vmatpush1.bf16.msra.mxu0 0
  %342 = vmatprep.subr.bf16.mxu0 0
  %343 = vmatpush1.bf16.msra.mxu0 0
  %344 = vmatprep.subr.bf16.mxu0 0
  %345 = vmatpush1.bf16.msra.mxu0 0
  %346 = vmatprep.subr.bf16.mxu0 0
  %347 = vmatpush1.bf16.msra.mxu0 %v330
  %348 = vmatprep.subr.bf16.mxu0 0
  %349 = vmatpush2.bf16.msra.mxu0 0
  %350 = vmatprep.subr.bf16.mxu0 0
  %351 = vmatpush2.bf16.msra.mxu0 0
  %352 = vmatprep.subr.bf16.mxu0 0
  %353 = vmatpush2.bf16.msra.mxu0 0
  %354 = vmatprep.subr.bf16.mxu0 0
  %355 = vmatpush2.bf16.msra.mxu0 0
  %356 = vmatprep.subr.bf16.mxu0 0
  %357 = vmatpush2.bf16.msra.mxu0 0
  %358 = vmatprep.subr.bf16.mxu0 0
  %359 = vmatpush2.bf16.msra.mxu0 0
  %360 = vmatprep.subr.bf16.mxu0 0
  %361 = vmatpush2.bf16.msra.mxu0 0
  %362 = vmatprep.subr.bf16.mxu0 0
  %363 = vmatpush2.bf16.msra.mxu0 0
  %364 = vmatprep.mubr.bf16.mxu0 0
  %365 = vmatmul.mubr.bf16.gmra.mxu0 %v54
  %v366 = vpop.f32.mrf.mxu0
  %v367 = vadd.f32 0.0, %v366
  %v368 = vpop.f32.mrf.mxu0
  %v369 = vpop.f32.mrf.mxu0
  %v370 = vadd.f32 0.0, %v369
  %v371 = vpop.f32.mrf.mxu0
  %372 = vdwg.mxu0
  %v373 = vadd.f32 %v22, %v367
  %v374 = vadd.f32 %v27, %v370
  %v375 = vld [vmem:[%s0 + $0x4] sm:$0xff]
  %v377 = vcombine.high %v375, %v375
  %v379 = vpack.c.bf16 %v375, %v375
  %v380 = vpack.c.bf16 %v377, %v377
  %383 = vrot.lane.b32.xlu0 %v379, 104
  %v384 = vpop.permute.xlu0 %383
  %385 = vrot.lane.b32.xlu0 %v380, 104
  %v386 = vpop.permute.xlu0 %385
  %vm387 = vcmask 850944
  %v388 = vsel %vm387, %v384, %v386
  %v390 = vsel %vm56, %v388, 0
  %392 = vmatprep.subr.bf16.mxu0 0
  %393 = vmatpush1.bf16.msra.mxu0 0
  %394 = vmatprep.subr.bf16.mxu0 0
  %395 = vmatpush1.bf16.msra.mxu0 0
  %396 = vmatprep.subr.bf16.mxu0 0
  %397 = vmatpush1.bf16.msra.mxu0 0
  %398 = vmatprep.subr.bf16.mxu0 0
  %399 = vmatpush1.bf16.msra.mxu0 0
  %400 = vmatprep.subr.bf16.mxu0 0
  %401 = vmatpush1.bf16.msra.mxu0 0
  %402 = vmatprep.subr.bf16.mxu0 0
  %403 = vmatpush1.bf16.msra.mxu0 0
  %404 = vmatprep.subr.bf16.mxu0 0
  %405 = vmatpush1.bf16.msra.mxu0 0
  %406 = vmatprep.subr.bf16.mxu0 0
  %407 = vmatpush1.bf16.msra.mxu0 %v390
  %408 = vmatprep.subr.bf16.mxu0 0
  %409 = vmatpush2.bf16.msra.mxu0 0
  %410 = vmatprep.subr.bf16.mxu0 0
  %411 = vmatpush2.bf16.msra.mxu0 0
  %412 = vmatprep.subr.bf16.mxu0 0
  %413 = vmatpush2.bf16.msra.mxu0 0
  %414 = vmatprep.subr.bf16.mxu0 0
  %415 = vmatpush2.bf16.msra.mxu0 0
  %416 = vmatprep.subr.bf16.mxu0 0
  %417 = vmatpush2.bf16.msra.mxu0 0
  %418 = vmatprep.subr.bf16.mxu0 0
  %419 = vmatpush2.bf16.msra.mxu0 0
  %420 = vmatprep.subr.bf16.mxu0 0
  %421 = vmatpush2.bf16.msra.mxu0 0
  %422 = vmatprep.subr.bf16.mxu0 0
  %423 = vmatpush2.bf16.msra.mxu0 0
  %424 = vmatprep.mubr.bf16.mxu0 0
  %425 = vmatmul.mubr.bf16.gmra.mxu0 %v120
  %v426 = vpop.f32.mrf.mxu0
  %v427 = vadd.f32 0.0, %v426
  %v428 = vpop.f32.mrf.mxu0
  %v429 = vpop.f32.mrf.mxu0
  %v430 = vadd.f32 0.0, %v429
  %v431 = vpop.f32.mrf.mxu0
  %432 = vdwg.mxu0
  %v433 = vadd.f32 %v373, %v427
  %v434 = vadd.f32 %v374, %v430
  %v435 = vld [vmem:[%s0 + $0x4] sm:$0xff]
  %v437 = vcombine.high %v435, %v435
  %v439 = vpack.c.bf16 %v435, %v435
  %v440 = vpack.c.bf16 %v437, %v437
  %443 = vrot.lane.b32.xlu0 %v439, 96
  %v444 = vpop.permute.xlu0 %443
  %445 = vrot.lane.b32.xlu0 %v440, 96
  %v446 = vpop.permute.xlu0 %445
  %vm447 = vcmask 785408
  %v448 = vsel %vm447, %v444, %v446
  %v450 = vsel %vm56, %v448, 0
  %452 = vmatprep.subr.bf16.mxu0 0
  %453 = vmatpush1.bf16.msra.mxu0 0
  %454 = vmatprep.subr.bf16.mxu0 0
  %455 = vmatpush1.bf16.msra.mxu0 0
  %456 = vmatprep.subr.bf16.mxu0 0
  %457 = vmatpush1.bf16.msra.mxu0 0
  %458 = vmatprep.subr.bf16.mxu0 0
  %459 = vmatpush1.bf16.msra.mxu0 0
  %460 = vmatprep.subr.bf16.mxu0 0
  %461 = vmatpush1.bf16.msra.mxu0 0
  %462 = vmatprep.subr.bf16.mxu0 0
  %463 = vmatpush1.bf16.msra.mxu0 0
  %464 = vmatprep.subr.bf16.mxu0 0
  %465 = vmatpush1.bf16.msra.mxu0 0
  %466 = vmatprep.subr.bf16.mxu0 0
  %467 = vmatpush1.bf16.msra.mxu0 %v450
  %468 = vmatprep.subr.bf16.mxu0 0
  %469 = vmatpush2.bf16.msra.mxu0 0
  %470 = vmatprep.subr.bf16.mxu0 0
  %471 = vmatpush2.bf16.msra.mxu0 0
  %472 = vmatprep.subr.bf16.mxu0 0
  %473 = vmatpush2.bf16.msra.mxu0 0
  %474 = vmatprep.subr.bf16.mxu0 0
  %475 = vmatpush2.bf16.msra.mxu0 0
  %476 = vmatprep.subr.bf16.mxu0 0
  %477 = vmatpush2.bf16.msra.mxu0 0
  %478 = vmatprep.subr.bf16.mxu0 0
  %479 = vmatpush2.bf16.msra.mxu0 0
  %480 = vmatprep.subr.bf16.mxu0 0
  %481 = vmatpush2.bf16.msra.mxu0 0
  %482 = vmatprep.subr.bf16.mxu0 0
  %483 = vmatpush2.bf16.msra.mxu0 0
  %484 = vmatprep.mubr.bf16.mxu0 0
  %485 = vmatmul.mubr.bf16.gmra.mxu0 %v185
  %v486 = vpop.f32.mrf.mxu0
  %v487 = vadd.f32 0.0, %v486
  %v488 = vpop.f32.mrf.mxu0
  %v489 = vpop.f32.mrf.mxu0
  %v490 = vadd.f32 0.0, %v489
  %v491 = vpop.f32.mrf.mxu0
  %492 = vdwg.mxu0
  %v493 = vadd.f32 %v433, %v487
  %v494 = vadd.f32 %v434, %v490
  %v495 = vxor.u32 %v493, 2147483648
  %v496 = vmul.f32 %v495, 1.442695
  %v497 = vpow.pop %v496
  %v498 = vadd.f32 %v497, 1.0
  %v499 = vrcp.pop %v498
  %v500 = vmul.f32 1.0, %v499
  %v502 = vrot.slane %v500, 4
  %v504 = vadd.f32 %v493, %v502
  %v505 = vadd.f32 %v504, %v494
  %v506 = vmax.f32 %v505, 0.0
  %507 = vmatprep.subr.mxu0 0.0
  %508 = vmatpush1.msra.mxu0 %v44
  %509 = vmatprep.subr.mxu0 0.0
  %510 = vmatpush1.msra.mxu0 %v43
  %511 = vmatprep.subr.mxu0 0.0
  %512 = vmatpush1.msra.mxu0 %v42
  %513 = vmatprep.subr.mxu0 0.0
  %514 = vmatpush1.msra.mxu0 %v41
  %515 = vmatprep.subr.mxu0 0.0
  %516 = vmatpush1.msra.mxu0 %v40
  %517 = vmatprep.subr.mxu0 0.0
  %518 = vmatpush1.msra.mxu0 %v39
  %519 = vmatprep.subr.mxu0 0.0
  %520 = vmatpush1.msra.mxu0 %v38
  %521 = vmatprep.subr.mxu0 0.0
  %522 = vmatpush1.msra.mxu0 %v37
  %523 = vmatprep.subr.mxu0 0.0
  %524 = vmatpush1.msra.mxu0 %v36
  %525 = vmatprep.subr.mxu0 0.0
  %526 = vmatpush1.msra.mxu0 %v35
  %527 = vmatprep.subr.mxu0 0.0
  %528 = vmatpush1.msra.mxu0 %v34
  %529 = vmatprep.subr.mxu0 0.0
  %530 = vmatpush1.msra.mxu0 %v33
  %531 = vmatprep.subr.mxu0 0.0
  %532 = vmatpush1.msra.mxu0 %v32
  %533 = vmatprep.subr.mxu0 0.0
  %534 = vmatpush1.msra.mxu0 %v31
  %535 = vmatprep.subr.mxu0 0.0
  %536 = vmatpush1.msra.mxu0 %v30
  %537 = vmatprep.subr.mxu0 0.0
  %538 = vmatpush1.msra.mxu0 %v29
  %539 = vmatprep.subr.mxu0 0.0
  %540 = vmatpush2.msra.mxu0 0.0
  %541 = vmatprep.subr.mxu0 0.0
  %542 = vmatpush2.msra.mxu0 0.0
  %543 = vmatprep.subr.mxu0 0.0
  %544 = vmatpush2.msra.mxu0 0.0
  %545 = vmatprep.subr.mxu0 0.0
  %546 = vmatpush2.msra.mxu0 0.0
  %547 = vmatprep.subr.mxu0 0.0
  %548 = vmatpush2.msra.mxu0 0.0
  %549 = vmatprep.subr.mxu0 0.0
  %550 = vmatpush2.msra.mxu0 0.0
  %551 = vmatprep.subr.mxu0 0.0
  %552 = vmatpush2.msra.mxu0 0.0
  %553 = vmatprep.subr.mxu0 0.0
  %554 = vmatpush2.msra.mxu0 0.0
  %555 = vmatprep.subr.mxu0 0.0
  %556 = vmatpush2.msra.mxu0 0.0
  %557 = vmatprep.subr.mxu0 0.0
  %558 = vmatpush2.msra.mxu0 0.0
  %559 = vmatprep.subr.mxu0 0.0
  %560 = vmatpush2.msra.mxu0 0.0
  %561 = vmatprep.subr.mxu0 0.0
  %562 = vmatpush2.msra.mxu0 0.0
  %563 = vmatprep.subr.mxu0 0.0
  %564 = vmatpush2.msra.mxu0 0.0
  %565 = vmatprep.subr.mxu0 0.0
  %566 = vmatpush2.msra.mxu0 0.0
  %567 = vmatprep.subr.mxu0 0.0
  %568 = vmatpush2.msra.mxu0 0.0
  %569 = vmatprep.subr.mxu0 0.0
  %570 = vmatpush2.msra.mxu0 0.0
  %571 = vmatprep.mubr.f32.mxu0 0.0
  %572 = vmatmul.mubr.f32.gmra.mxu0 %v506
  %v573 = vpop.f32.mrf.mxu0
  %v574 = vadd.f32 0.0, %v573
  %v575 = vpop.f32.mrf.mxu0
  %576 = vdwg.mxu0
  %577 = vst [vmem:[%s3 + $0x4] sm:$0xf] %v574
  // Predicated region
  $region14: #{forward.1} parent=0 // pred_check
    _
  $region15: #{forward.1} parent=0 // pred_check_branch
    %579 = sbr.rel (0) target = $region17
  $region16: #{forward.1} parent=0 // pred_region
    _
  $region17: #{forward.1} parent=0 // pred_fallthru
    _
  // Predicated region
  $region18: #{forward.1} parent=0 // pred_check
    _
  $region19: #{forward.1} parent=0 // pred_check_branch
    %581 = sbr.rel (0) target = $region21
  $region20: #{forward.1} parent=0 // pred_region
    _
  $region21: #{forward.1} parent=0 // pred_fallthru
    _

</llo_original>
